<compile_context>
chip_gen: v7x
topology: tpu7x:2x2x1
jax: 0.10.0
libtpu: 0.0.40
codegen_flags: <defaults>
</compile_context>

<pallas_src>
import functools
import math

import jax
import jax.numpy as jnp
from jax import lax
from jax.experimental import pallas as pl
from jax.experimental.pallas import tpu as pltpu


_CONV_VMEM_LIMIT = 48 * 1024 * 1024
_CAM_VMEM_LIMIT = 48 * 1024 * 1024
_PAM_VMEM_LIMIT = 32 * 1024 * 1024


# ---------------------------------------------------------------------------
# small helpers
# ---------------------------------------------------------------------------

def _round_up(x, m):
    return -(-x // m) * m


def _pick_tile(c):
    """Largest channel tile that is a multiple of 128 and divides c, else the full dim."""
    for t in (512, 256, 128):
        if c % t == 0:
            return t
    return c


def _apply_act(y, act):
    if act == "relu":
        return jnp.maximum(y, 0.0)
    if act == "sigmoid":
        return 1.0 / (1.0 + jnp.exp(-y))
    return y


# ---------------------------------------------------------------------------
# Pallas kernels: 3x3 conv
# ---------------------------------------------------------------------------

def _conv_taps(x_ref, w_ref, wp, m):
    """Sum of the 9 row/col-shifted matmuls for the current (tk, tn) tile -> f32 (m, tn).

    x_ref : (1, lp, TK) bf16 flattened, spatially padded input; row stride wp, wp % 8 == 0.
    w_ref : (9, TK, TN) bf16 per-tap weights, tap index t = 3*dh + dw.
    """
    span = m + 2 * wp
    acc = None
    for dw in range(3):
        # One sublane-shifted load per column offset (dw=0 is aligned & free).  The dh
        # slices below then start at multiples of wp (wp % 8 == 0) -> 8-aligned, cheap.
        xs = x_ref[0, dw:dw + span, :]                       # (span, TK) bf16
        for dh in range(3):
            xt = xs[dh * wp: dh * wp + m, :]                 # (m, TK), aligned slice
            d = jnp.dot(xt, w_ref[3 * dh + dw], preferred_element_type=jnp.float32)
            acc = d if acc is None else acc + d
    return acc                                               # (m, TN) f32


def _conv3x3_kernel_direct(x_ref, w_ref, s_ref, b_ref, o_ref, *, wp, m, act):
    """No input-channel reduction axis: compute, fuse affine + activation, store."""
    y = _conv_taps(x_ref, w_ref, wp, m)
    y = y * s_ref[...] + b_ref[...]
    o_ref[...] = _apply_act(y, act)[None].astype(o_ref.dtype)


def _conv3x3_kernel_acc(x_ref, w_ref, s_ref, b_ref, o_ref, acc_ref, *, wp, m, act):
    """Input channels tiled (reduction grid axis): one scratch RMW per k-step."""
    k = pl.program_id(2)
    y = _conv_taps(x_ref, w_ref, wp, m)

    @pl.when(k == 0)
    def _():
        acc_ref[...] = y

    @pl.when(k > 0)
    def _():
        acc_ref[...] += y

    @pl.when(k == pl.num_programs(2) - 1)
    def _():
        out = acc_ref[...] * s_ref[...] + b_ref[...]         # f32 epilogue
        o_ref[...] = _apply_act(out, act)[None].astype(o_ref.dtype)


def conv3x3(x, p, act=None, out_dtype=jnp.bfloat16):
    """3x3 conv (stride 1, pad 1) + fused affine/activation.  x: (B, H, W, C) bf16."""
    B, H, W, C = x.shape
    cout = p["w"].shape[-1]

    if C <= 8:                                   # stem conv: im2col matmul (K=9*C -> pad)
        return _conv3x3_small_cin(x, p, act, out_dtype)

    wp = _round_up(W + 2, 8)                     # row stride, padded to a multiple of 8
    Hp = H + 3                                   # 1 top pad row, 2 bottom (1 + slack)
    lp = Hp * wp
    m = H * wp                                   # rows produced per image
    tk = _pick_tile(C)
    tn = _pick_tile(cout)
    nk = C // tk
    nj = cout // tn

    xpad = jnp.pad(x, ((0, 0), (1, Hp - H - 1), (1, wp - W - 1), (0, 0)))
    xflat = xpad.reshape(B, lp, C)               # (B, lp, C) bf16

    if nk == 1:
        # Grid (out-tile, batch): weight block index is constant across batch -> fetched
        # once per output tile (Pallas skips the DMA when the block index is unchanged).
        out = pl.pallas_call(
            functools.partial(_conv3x3_kernel_direct, wp=wp, m=m, act=act),
            out_shape=jax.ShapeDtypeStruct((B, m, cout), out_dtype),
            grid_spec=pltpu.PrefetchScalarGridSpec(
                num_scalar_prefetch=0,
                grid=(nj, B),
                in_specs=[
                    pl.BlockSpec((1, lp, tk), lambda j, b: (b, 0, 0)),
                    pl.BlockSpec((9, tk, tn), lambda j, b: (0, 0, j)),
                    pl.BlockSpec((1, tn), lambda j, b: (0, j)),
                    pl.BlockSpec((1, tn), lambda j, b: (0, j)),
                ],
                out_specs=pl.BlockSpec((1, m, tn), lambda j, b: (b, 0, j)),
            ),
            compiler_params=pltpu.CompilerParams(
                dimension_semantics=("parallel", "parallel"),
                vmem_limit_bytes=_CONV_VMEM_LIMIT),
        )(xflat, p["w"], p["scale"], p["shift"])
    else:
        out = pl.pallas_call(
            functools.partial(_conv3x3_kernel_acc, wp=wp, m=m, act=act),
            out_shape=jax.ShapeDtypeStruct((B, m, cout), out_dtype),
            grid_spec=pltpu.PrefetchScalarGridSpec(
                num_scalar_prefetch=0,
                grid=(nj, B, nk),
                in_specs=[
                    pl.BlockSpec((1, lp, tk), lambda j, b, k: (b, 0, k)),
                    pl.BlockSpec((9, tk, tn), lambda j, b, k: (0, k, j)),
                    pl.BlockSpec((1, tn), lambda j, b, k: (0, j)),
                    pl.BlockSpec((1, tn), lambda j, b, k: (0, j)),
                ],
                out_specs=pl.BlockSpec((1, m, tn), lambda j, b, k: (b, 0, j)),
                scratch_shapes=[pltpu.VMEM((m, tn), jnp.float32)],
            ),
            compiler_params=pltpu.CompilerParams(
                dimension_semantics=("parallel", "parallel", "arbitrary"),
                vmem_limit_bytes=_CONV_VMEM_LIMIT),
        )(xflat, p["w"], p["scale"], p["shift"])

    # drop the junk columns per row introduced by the padded row layout
    return out.reshape(B, H, wp, cout)[:, :, :W, :]


def _conv3x3_small_cin(x, p, act, out_dtype):
    """Stem conv (tiny cin): one im2col matmul, K = 9*cin padded to a multiple of 8."""
    B, H, W, C = x.shape
    cout = p["w"].shape[-1]
    xp = jnp.pad(x, ((0, 0), (1, 1), (1, 1), (0, 0)))
    patches = [xp[:, dh:dh + H, dw:dw + W, :] for dh in range(3) for dw in range(3)]
    xi = jnp.stack(patches, axis=3).reshape(B * H * W, 9 * C)        # (M, 9*C), tap-major
    w2 = p["w"].reshape(9 * C, cout)                                 # (9*C, cout) bf16
    kpad = _round_up(9 * C, 8)
    if kpad > 9 * C:
        xi = jnp.pad(xi, ((0, 0), (0, kpad - 9 * C)))
        w2 = jnp.pad(w2, ((0, kpad - 9 * C), (0, 0)))
    pp = {"w": w2, "scale": p["scale"], "shift": p["shift"]}
    y = matmul_bias(xi, pp, act=act, out_dtype=out_dtype)
    return y.reshape(B, H, W, cout)


# ---------------------------------------------------------------------------
# Pallas kernels: matmul + affine (fused PAM q/k/v 1x1 projection, im2col stem)
# ---------------------------------------------------------------------------

def _mm_bias_kernel(x_ref, w_ref, s_ref, b_ref, o_ref, *, act):
    y = jnp.dot(x_ref[...], w_ref[...], preferred_element_type=jnp.float32)
    y = y * s_ref[...] + b_ref[...]
    o_ref[...] = _apply_act(y, act).astype(o_ref.dtype)


def _matmul_bias_call(x2d, p, act, out_dtype, tm):
    M, K = x2d.shape
    N = p["w"].shape[-1]
    return pl.pallas_call(
        functools.partial(_mm_bias_kernel, act=act),
        out_shape=jax.ShapeDtypeStruct((M, N), out_dtype),
        grid_spec=pltpu.PrefetchScalarGridSpec(
            num_scalar_prefetch=0,
            grid=(M // tm,),
            in_specs=[
                pl.BlockSpec((tm, K), lambda i: (i, 0)),
                pl.BlockSpec((K, N), lambda i: (0, 0)),
                pl.BlockSpec((1, N), lambda i: (0, 0)),
                pl.BlockSpec((1, N), lambda i: (0, 0)),
            ],
            out_specs=pl.BlockSpec((tm, N), lambda i: (i, 0)),
        ),
        compiler_params=pltpu.CompilerParams(dimension_semantics=("parallel",)),
    )(x2d, p["w"], p["scale"], p["shift"])


def matmul_bias(x2d, p, act=None, out_dtype=jnp.bfloat16):
    """(M,K)@(K,N) + per-column affine + activation."""
    M, _ = x2d.shape
    if M % 512 == 0 and M // 512 >= 2:
        return _matmul_bias_call(x2d, p, act, out_dtype, 512)
    if M % 256 == 0:
        return _matmul_bias_call(x2d, p, act, out_dtype, min(M, 256))
    if M > 256:
        mp = _round_up(M, 256)                   # padded fallback: no unpipelined mega-block
        xp = jnp.pad(x2d, ((0, mp - M), (0, 0)))
        return _matmul_bias_call(xp, p, act, out_dtype, 256)[:M]
    return _matmul_bias_call(x2d, p, act, out_dtype, M)


# ---------------------------------------------------------------------------
# Pallas kernels: PAM (position attention), flash-style online softmax
# ---------------------------------------------------------------------------

def _pam_kernel(q_ref, k_ref, v_ref, x_ref, o_ref, m_ref, l_ref, acc_ref, *, gamma):
    j = pl.program_id(2)

    @pl.when(j == 0)
    def _():
        m_ref[...] = jnp.full(m_ref.shape, -jnp.inf, dtype=m_ref.dtype)
        l_ref[...] = jnp.zeros_like(l_ref)
        acc_ref[...] = jnp.zeros_like(acc_ref)

    q = q_ref[0]                                              # (TQ, 128) bf16
    k = k_ref[0]                                              # (TKV, 128) bf16
    s = lax.dot_general(q, k, (((1,), (1,)), ((), ())),
                        preferred_element_type=jnp.float32)   # (TQ, TKV)

    m_prev = m_ref[...]
    m_new = jnp.maximum(m_prev, jnp.max(s, axis=-1, keepdims=True))
    alpha = jnp.exp(m_prev - m_new)
    p = jnp.exp(s - m_new)
    l_ref[...] = alpha * l_ref[...] + jnp.sum(p, axis=-1, keepdims=True)
    acc_ref[...] = alpha * acc_ref[...] + jnp.dot(
        p.astype(jnp.bfloat16), v_ref[0], preferred_element_type=jnp.float32)
    m_ref[...] = m_new

    @pl.when(j == pl.num_programs(2) - 1)
    def _():
        out = acc_ref[...] / l_ref[...]                       # exact softmax normalization
        res = gamma * out + x_ref[0].astype(jnp.float32)
        o_ref[...] = res[None].astype(o_ref.dtype)


def pam_attention(q, k, v, x, gamma):
    B, HW, Cq = q.shape
    C = x.shape[-1]
    if HW % 256 == 0:
        TQ = TKV = 256                                        # fills the 256-wide v6e/v7x MXU
    elif HW % 128 == 0:
        TQ = TKV = 128
    else:
        TQ = TKV = HW
    return pl.pallas_call(
        functools.partial(_pam_kernel, gamma=gamma),
        out_shape=jax.ShapeDtypeStruct((B, HW, C), jnp.bfloat16),
        grid_spec=pltpu.PrefetchScalarGridSpec(
            num_scalar_prefetch=0,
            grid=(B, HW // TQ, HW // TKV),
            in_specs=[
                pl.BlockSpec((1, TQ, Cq), lambda b, i, j: (b, i, 0)),
                pl.BlockSpec((1, TKV, Cq), lambda b, i, j: (b, j, 0)),
                pl.BlockSpec((1, TKV, C), lambda b, i, j: (b, j, 0)),
                pl.BlockSpec((1, TQ, C), lambda b, i, j: (b, i, 0)),
            ],
            out_specs=pl.BlockSpec((1, TQ, C), lambda b, i, j: (b, i, 0)),
            scratch_shapes=[pltpu.VMEM((TQ, 1), jnp.float32),
                            pltpu.VMEM((TQ, 1), jnp.float32),
                            pltpu.VMEM((TQ, C), jnp.float32)],
        ),
        compiler_params=pltpu.CompilerParams(
            dimension_semantics=("parallel", "parallel", "arbitrary"),
            vmem_limit_bytes=_PAM_VMEM_LIMIT),
    )(q, k, v, x)


# ---------------------------------------------------------------------------
# Pallas kernels: CAM (channel attention), HW-blocked two-pass
# ---------------------------------------------------------------------------

def _cam_gram_kernel(x_ref, att_ref, acc_ref):
    """Pass 1: accumulate the (C,C) Gram over HW tiles, softmax once at the end."""
    j = pl.program_id(1)

    @pl.when(j == 0)
    def _():
        acc_ref[...] = jnp.zeros_like(acc_ref)

    x = x_ref[0]                                              # (T, C) bf16
    acc_ref[...] += lax.dot_general(x, x, (((0,), (0,)), ((), ())),
                                    preferred_element_type=jnp.float32)

    @pl.when(j == pl.num_programs(1) - 1)
    def _():
        energy = acc_ref[...]                                 # (C, C)
        energy = jnp.max(energy, axis=-1, keepdims=True) - energy
        mx = jnp.max(energy, axis=-1, keepdims=True)
        e = jnp.exp(energy - mx)
        att = e / jnp.sum(e, axis=-1, keepdims=True)
        att_ref[0] = att.astype(att_ref.dtype)


def _cam_apply_kernel(att_ref, x_ref, o_ref, *, gamma):
    """Pass 2: out = gamma * (x @ att^T) + x, one HW tile per grid step."""
    x = x_ref[0]                                              # (T, C) bf16
    out = lax.dot_general(x, att_ref[0], (((1,), (1,)), ((), ())),
                          preferred_element_type=jnp.float32)
    res = gamma * out + x.astype(jnp.float32)
    o_ref[0] = res.astype(o_ref.dtype)


def cam_attention(x, gamma):
    B, HW, C = x.shape
    T = HW
    for t in (512, 256, 128):
        if HW % t == 0:
            T = t
            break
    att = pl.pallas_call(
        _cam_gram_kernel,
        out_shape=jax.ShapeDtypeStruct((B, C, C), jnp.bfloat16),
        grid_spec=pltpu.PrefetchScalarGridSpec(
            num_scalar_prefetch=0,
            grid=(B, HW // T),
            in_specs=[pl.BlockSpec((1, T, C), lambda b, j: (b, j, 0))],
            out_specs=pl.BlockSpec((1, C, C), lambda b, j: (b, 0, 0)),
            scratch_shapes=[pltpu.VMEM((C, C), jnp.float32)],
        ),
        compiler_params=pltpu.CompilerParams(
            dimension_semantics=("parallel", "arbitrary"),
            vmem_limit_bytes=_CAM_VMEM_LIMIT),
    )(x)
    return pl.pallas_call(
        functools.partial(_cam_apply_kernel, gamma=gamma),
        out_shape=jax.ShapeDtypeStruct((B, HW, C), jnp.bfloat16),
        grid_spec=pltpu.PrefetchScalarGridSpec(
            num_scalar_prefetch=0,
            grid=(B, HW // T),
            in_specs=[
                pl.BlockSpec((1, C, C), lambda b, j: (b, 0, 0)),   # att fetched once per b
                pl.BlockSpec((1, T, C), lambda b, j: (b, j, 0)),
            ],
            out_specs=pl.BlockSpec((1, T, C), lambda b, j: (b, j, 0)),
        ),
        compiler_params=pltpu.CompilerParams(
            dimension_semantics=("parallel", "parallel"),
            vmem_limit_bytes=_CAM_VMEM_LIMIT),
    )(att, x)


# ---------------------------------------------------------------------------
# layer helpers (thin JAX glue around the Pallas kernels)
# ---------------------------------------------------------------------------

def maxpool2(x):
    # kernel=2, stride=2; all spatial extents used here are even so ceil_mode is irrelevant.
    B, H, W, C = x.shape
    return x.reshape(B, H // 2, 2, W // 2, 2, C).max(axis=(2, 4))


def upsample_bilinear(x, scale):
    """Bilinear upsample by integer factor, PyTorch align_corners=False semantics."""
    B, H, W, C = x.shape
    oh, ow = H * scale, W * scale

    def src(n_in, n_out):
        d = (jnp.arange(n_out, dtype=jnp.float32) + 0.5) * (n_in / n_out) - 0.5
        d = jnp.maximum(d, 0.0)
        i0 = jnp.minimum(jnp.floor(d).astype(jnp.int32), n_in - 1)
        i1 = jnp.minimum(i0 + 1, n_in - 1)
        w1 = d - i0.astype(jnp.float32)
        return i0, i1, w1

    hi0, hi1, hw1 = src(H, oh)
    wi0, wi1, ww1 = src(W, ow)
    xf = x.astype(jnp.float32)

    def horiz(t):
        return (t[:, :, wi0, :] * (1.0 - ww1)[None, None, :, None]
                + t[:, :, wi1, :] * ww1[None, None, :, None])

    top = horiz(xf[:, hi0, :, :])
    bot = horiz(xf[:, hi1, :, :])
    out = top * (1.0 - hw1)[None, :, None, None] + bot * hw1[None, :, None, None]
    return out.astype(x.dtype)


def pam_cam_layer(x, p):
    """PAM_CAM_Layer(x) = PAM(x) + CAM(x) (DANet attention modules)."""
    B, H, W, C = x.shape
    HW = H * W
    x_hw = x.reshape(B, HW, C)
    # fused q/k/v projection: one matmul; q/k columns are zero-padded to 128 so the
    # slices below are 128-lane aligned (numerically identical to the cq-wide projection).
    qkv = matmul_bias(x_hw.reshape(B * HW, C), p["qkv"]).reshape(B, HW, 256 + C)
    q = qkv[..., :128]
    k = qkv[..., 128:256]
    v = qkv[..., 256:]
    pam = pam_attention(q, k, v, x_hw, p["gamma_pam"])
    cam = cam_attention(x_hw, p["gamma_cam"])
    return (pam + cam).reshape(B, H, W, C)


# ---------------------------------------------------------------------------
# deterministic parameter construction (pre-packed, pre-cast)
# ---------------------------------------------------------------------------

class _Gen:
    def __init__(self, seed):
        self.key = jax.random.PRNGKey(seed)
        self.i = 0

    def next(self):
        self.i += 1
        return jax.random.fold_in(self.key, self.i)


def _conv3x3_p(gen, cin, cout, bn=False, cout_pad=None):
    w = jax.random.normal(gen.next(), (3, 3, cin, cout), jnp.float32) \
        * math.sqrt(2.0 / (cin * 9))                 # kaiming_normal, fan_in
    bias = jnp.zeros((cout,), jnp.float32)           # init.constant_(bias, 0)
    if bn:
        gamma = 1.0 + 0.02 * jax.random.normal(gen.next(), (cout,), jnp.float32)
        scale = gamma / jnp.sqrt(1.0 + 1e-5)         # running_var = 1, eps = 1e-5
        shift = bias * scale                         # running_mean = 0, beta = 0
    else:
        scale = jnp.ones((cout,), jnp.float32)
        shift = bias
    if cout_pad is not None and cout_pad > cout:     # lane-dense padding (extra channels
        w = jnp.pad(w, ((0, 0), (0, 0), (0, 0), (0, cout_pad - cout)))   # are zeros, sliced
        scale = jnp.pad(scale, (0, cout_pad - cout), constant_values=1.0)  # off in JAX)
        shift = jnp.pad(shift, (0, cout_pad - cout))
        cout = cout_pad
    return {"w": w.reshape(9, cin, cout).astype(jnp.bfloat16),   # (tap, Cin, Cout) bf16
            "scale": scale.reshape(1, cout),
            "shift": shift.reshape(1, cout)}


def _att_p(gen, c):
    cq = c // 8

    def w_block(cout_real, cout_pad):
        w = jax.random.normal(gen.next(), (c, cout_real), jnp.float32) * math.sqrt(2.0 / c)
        if cout_pad > cout_real:
            w = jnp.pad(w, ((0, 0), (0, cout_pad - cout_real)))
        return w

    # q / k projections zero-padded to 128 output channels -> lane-aligned qkv slices.
    w = jnp.concatenate([w_block(cq, 128), w_block(cq, 128), w_block(c, c)],
                        axis=1).astype(jnp.bfloat16)
    n = 256 + c
    return {"qkv": {"w": w,
                    "scale": jnp.ones((1, n), jnp.float32),
                    "shift": jnp.zeros((1, n), jnp.float32)},
            # TODO(synk): PyTorch initialises gamma to 0.0 (attention branch inert at
            # init); 0.1 is used here so the attention kernels contribute non-trivially.
            "gamma_pam": 0.1,
            "gamma_cam": 0.1}


def build_params(in_channels=3, n_classes=2):
    g = _Gen(1234)
    f = [64, 128, 256, 512, 1024]
    up = 64 * 5
    P = {"n_classes": n_classes}
    P["conv1"] = {"c1": _conv3x3_p(g, in_channels, f[0], bn=True), "c2": _conv3x3_p(g, f[0], f[0], bn=True)}
    P["conv2"] = {"c1": _conv3x3_p(g, f[0], f[1], bn=True), "c2": _conv3x3_p(g, f[1], f[1], bn=True)}
    P["conv3"] = {"c1": _conv3x3_p(g, f[1], f[2], bn=True), "c2": _conv3x3_p(g, f[2], f[2], bn=True)}
    P["conv4"] = {"c1": _conv3x3_p(g, f[2], f[3], bn=True), "c2": _conv3x3_p(g, f[3], f[3], bn=True)}
    P["conv5"] = {"c1": _conv3x3_p(g, f[3], f[4], bn=True), "c2": _conv3x3_p(g, f[4], f[4], bn=True)}
    P["cat1"] = _conv3x3_p(g, f[0] + f[1], f[1])
    P["cat2"] = _conv3x3_p(g, f[1] + f[2], f[2])
    P["cat3"] = _conv3x3_p(g, f[2] + f[3], f[3])
    P["cat4"] = _conv3x3_p(g, f[3] + f[4], f[4])
    for i, c in enumerate(f, start=1):
        P[f"att{i}"] = _att_p(g, c)
    # stage 4d
    P["h3_PT_hd4"] = _conv3x3_p(g, f[2], 64, bn=True)
    P["h4_Cat_hd4"] = _conv3x3_p(g, f[3], 64, bn=True)
    P["hd5_UT_hd4"] = _conv3x3_p(g, f[4], 64, bn=True)
    P["conv4d_1"] = _conv3x3_p(g, 64 * 3, up, bn=True)
    # stage 3d
    P["h2_PT_hd3"] = _conv3x3_p(g, f[1], 64, bn=True)
    P["h3_Cat_hd3"] = _conv3x3_p(g, f[2], 64, bn=True)
    P["hd4_UT_hd3"] = _conv3x3_p(g, up, 64, bn=True)
    P["hd5_UT_hd3"] = _conv3x3_p(g, f[4], 64, bn=True)
    P["conv3d_1"] = _conv3x3_p(g, 64 * 4, up, bn=True)
    # stage 2d
    P["h1_PT_hd2"] = _conv3x3_p(g, f[0], 64, bn=True)
    P["h2_Cat_hd2"] = _conv3x3_p(g, f[1], 64, bn=True)
    P["hd3_UT_hd2"] = _conv3x3_p(g, up, 64, bn=True)
    P["hd4_UT_hd2"] = _conv3x3_p(g, up, 64, bn=True)
    P["hd5_UT_hd2"] = _conv3x3_p(g, f[4], 64, bn=True)
    P["conv2d_1"] = _conv3x3_p(g, 64 * 5, up, bn=True)
    # stage 1d
    P["h1_Cat_hd1"] = _conv3x3_p(g, f[0], 64, bn=True)
    P["hd2_UT_hd1"] = _conv3x3_p(g, up, 64, bn=True)
    P["hd3_UT_hd1"] = _conv3x3_p(g, up, 64, bn=True)
    P["hd4_UT_hd1"] = _conv3x3_p(g, up, 64, bn=True)
    P["hd5_UT_hd1"] = _conv3x3_p(g, f[4], 64, bn=True)
    P["conv1d_1"] = _conv3x3_p(g, 64 * 5, up, bn=True)
    # outconv: output channels padded to 128 for lane-dense stores (sliced in JAX).
    P["outconv1"] = _conv3x3_p(g, up, n_classes, cout_pad=128)
    return P


# ---------------------------------------------------------------------------
# full forward pass
# ---------------------------------------------------------------------------

def unet3plus_forward(x_nchw, P):
    x = jnp.transpose(x_nchw, (0, 2, 3, 1)).astype(jnp.bfloat16)   # -> NHWC, bf16

    def uconv(h, pp):   # unetConv2: 2 x (conv3x3 + BN + ReLU)
        h = conv3x3(h, pp["c1"], act="relu")
        return conv3x3(h, pp["c2"], act="relu")

    # ---------------- encoder ----------------
    E1 = uconv(x, P["conv1"])
    A1 = pam_cam_layer(E1, P["att1"])
    E1 = maxpool2(E1)
    E2 = uconv(E1, P["conv2"])
    E2_cat = conv3x3(jnp.concatenate([E1, E2], -1), P["cat1"])
    A2 = pam_cam_layer(E2_cat, P["att2"])
    E2 = maxpool2(E2)
    E3 = uconv(E2, P["conv3"])
    E3_cat = conv3x3(jnp.concatenate([E2, E3], -1), P["cat2"])
    A3 = pam_cam_layer(E3_cat, P["att3"])
    E3 = maxpool2(E3)
    E4 = uconv(E3, P["conv4"])
    E4_cat = conv3x3(jnp.concatenate([E3, E4], -1), P["cat3"])
    A4 = pam_cam_layer(E4_cat, P["att4"])
    E4 = maxpool2(E4)
    E5 = uconv(E4, P["conv5"])
    E5_cat = conv3x3(jnp.concatenate([E4, E5], -1), P["cat4"])
    A5 = pam_cam_layer(E5_cat, P["att5"])
    D5 = A5

    # ---------------- decoder: stage 4d ----------------
    # TODO(synk): same-shape branch convs could be batched into one pallas_call with a
    # branch grid axis to cut launch overhead further at small resolutions.
    A3_D4 = conv3x3(maxpool2(A3), P["h3_PT_hd4"], act="relu")
    A4_D4 = conv3x3(A4, P["h4_Cat_hd4"], act="relu")
    D5_D4 = conv3x3(upsample_bilinear(D5, 2), P["hd5_UT_hd4"], act="relu")
    D4 = conv3x3(jnp.concatenate([A3_D4, A4_D4, D5_D4], -1), P["conv4d_1"], act="relu")

    # ---------------- stage 3d ----------------
    A2_D3 = conv3x3(maxpool2(A2), P["h2_PT_hd3"], act="relu")
    A3_D3 = conv3x3(A3, P["h3_Cat_hd3"], act="relu")
    D4_D3 = conv3x3(upsample_bilinear(D4, 2), P["hd4_UT_hd3"], act="relu")
    D5_D3 = conv3x3(upsample_bilinear(D5, 4), P["hd5_UT_hd3"], act="relu")
    D3 = conv3x3(jnp.concatenate([A2_D3, A3_D3, D4_D3, D5_D3], -1), P["conv3d_1"], act="relu")

    # ---------------- stage 2d ----------------
    A1_D2 = conv3x3(maxpool2(A1), P["h1_PT_hd2"], act="relu")
    A2_D2 = conv3x3(A2, P["h2_Cat_hd2"], act="relu")
    D3_D2 = conv3x3(upsample_bilinear(D3, 2), P["hd3_UT_hd2"], act="relu")
    D4_D2 = conv3x3(upsample_bilinear(D4, 4), P["hd4_UT_hd2"], act="relu")
    D5_D2 = conv3x3(upsample_bilinear(D5, 8), P["hd5_UT_hd2"], act="relu")
    D2 = conv3x3(jnp.concatenate([A1_D2, A2_D2, D3_D2, D4_D2, D5_D2], -1),
                 P["conv2d_1"], act="relu")

    # ---------------- stage 1d ----------------
    A1_D1 = conv3x3(A1, P["h1_Cat_hd1"], act="relu")
    D2_D1 = conv3x3(upsample_bilinear(D2, 2), P["hd2_UT_hd1"], act="relu")
    D3_D1 = conv3x3(upsample_bilinear(D3, 4), P["hd3_UT_hd1"], act="relu")
    D4_D1 = conv3x3(upsample_bilinear(D4, 8), P["hd4_UT_hd1"], act="relu")
    D5_D1 = conv3x3(upsample_bilinear(D5, 16), P["hd5_UT_hd1"], act="relu")
    D1 = conv3x3(jnp.concatenate([A1_D1, D2_D1, D3_D1, D4_D1, D5_D1], -1),
                 P["conv1d_1"], act="relu")

    d1 = conv3x3(D1, P["outconv1"], act="sigmoid", out_dtype=jnp.float32)  # outconv + sigmoid
    d1 = d1[..., :P["n_classes"]]                       # drop lane-padding channels
    return jnp.transpose(d1, (0, 3, 1, 2))              # -> NCHW (B, n_classes, H, W)


# ---------------------------------------------------------------------------
# demo
# ---------------------------------------------------------------------------

if __name__ == "__main__":
    params = build_params(in_channels=3, n_classes=2)
    key = jax.random.PRNGKey(0)
    x = jax.random.normal(key, (2, 3, 16, 16), dtype=jnp.float32)   # NCHW input

    out = unet3plus_forward(x, params)
    out = jax.block_until_ready(out)

    assert out.shape == (2, 2, 16, 16), out.shape
    assert bool(jnp.all(jnp.isfinite(out)))
    assert bool(jnp.all((out >= 0.0) & (out <= 1.0)))   # sigmoid output range
    print("KERNEL_OK")
</pallas_src>

<mosaic_0001>
module attributes {stable_mosaic.version = 11 : i64} {
  func.func @_mm_bias_kernel(%arg0: i32, %arg1: memref<256x32xbf16, #tpu.memory_space<vmem>>, %arg2: memref<32x64xbf16, #tpu.memory_space<vmem>>, %arg3: memref<1x64xf32, #tpu.memory_space<vmem>>, %arg4: memref<1x64xf32, #tpu.memory_space<vmem>>, %arg5: memref<256x64xbf16, #tpu.memory_space<vmem>>) attributes {dimension_semantics = [#tpu.dimension_semantics<parallel>], iteration_bounds = array<i64: 2>, scalar_prefetch = 0 : i64, scratch_operands = 0 : i64, tpu.core_type = #tpu.core_type<tc>, window_params = [{transform_indices = @transform_0, window_bounds = array<i64: 256, 32>}, {pipeline_mode = #tpu.pipeline_mode<synchronous>, transform_indices = @transform_1, window_bounds = array<i64: 32, 64>}, {pipeline_mode = #tpu.pipeline_mode<synchronous>, transform_indices = @transform_2, window_bounds = array<i64: 1, 64>}, {pipeline_mode = #tpu.pipeline_mode<synchronous>, transform_indices = @transform_3, window_bounds = array<i64: 1, 64>}, {transform_indices = @transform_4, window_bounds = array<i64: 256, 64>}]} {
    %c0 = arith.constant 0 : index
    %c0_0 = arith.constant 0 : index
    %0 = vector.load %arg1[%c0, %c0_0] : memref<256x32xbf16, #tpu.memory_space<vmem>>, vector<256x32xbf16>
    %c0_1 = arith.constant 0 : index
    %c0_2 = arith.constant 0 : index
    %1 = vector.load %arg2[%c0_1, %c0_2] : memref<32x64xbf16, #tpu.memory_space<vmem>>, vector<32x64xbf16>
    %cst = arith.constant dense<0.000000e+00> : vector<256x64xf32>
    %2 = tpu.matmul %0, %1, %cst {dimension_numbers = #tpu.dot_dimension_numbers<[1], [0], [0], [1], [0, 0, 1, 1], [], []>} : vector<256x32xbf16>, vector<32x64xbf16>, vector<256x64xf32> -> vector<256x64xf32>
    %c0_3 = arith.constant 0 : index
    %c0_4 = arith.constant 0 : index
    %3 = vector.load %arg3[%c0_3, %c0_4] : memref<1x64xf32, #tpu.memory_space<vmem>>, vector<1x64xf32>
    %4 = vector.broadcast %3 : vector<1x64xf32> to vector<256x64xf32>
    %5 = arith.mulf %2, %4 : vector<256x64xf32>
    %c0_5 = arith.constant 0 : index
    %c0_6 = arith.constant 0 : index
    %6 = vector.load %arg4[%c0_5, %c0_6] : memref<1x64xf32, #tpu.memory_space<vmem>>, vector<1x64xf32>
    %7 = vector.broadcast %6 : vector<1x64xf32> to vector<256x64xf32>
    %8 = arith.addf %5, %7 : vector<256x64xf32>
    %cst_7 = arith.constant 0.000000e+00 : f32
    %9 = vector.broadcast %cst_7 : f32 to vector<256x64xf32>
    %10 = arith.maximumf %8, %9 : vector<256x64xf32>
    %11 = arith.truncf %10 : vector<256x64xf32> to vector<256x64xbf16>
    %c0_8 = arith.constant 0 : index
    %c0_9 = arith.constant 0 : index
    %12 = vector.load %arg5[%c0_8, %c0_9] : memref<256x64xbf16, #tpu.memory_space<vmem>>, vector<256x64xbf16>
    tpu.vector_store %arg5[%c0_8, %c0_9], %11 {strides = array<i32>} : memref<256x64xbf16, #tpu.memory_space<vmem>>, vector<256x64xbf16>,
    return
  }
  func.func @transform_0(%arg0: i32) -> (i32, i32) {
    %c0_i32 = arith.constant 0 : i32
    %c0_i32_0 = arith.constant 0 : i32
    return %arg0, %c0_i32 : i32, i32
  }
  func.func @transform_1(%arg0: i32) -> (i32, i32) {
    %c0_i32 = arith.constant 0 : i32
    %c0_i32_0 = arith.constant 0 : i32
    %c0_i32_1 = arith.constant 0 : i32
    return %c0_i32, %c0_i32_0 : i32, i32
  }
  func.func @transform_2(%arg0: i32) -> (i32, i32) {
    %c0_i32 = arith.constant 0 : i32
    %c0_i32_0 = arith.constant 0 : i32
    %c0_i32_1 = arith.constant 0 : i32
    return %c0_i32, %c0_i32_0 : i32, i32
  }
  func.func @transform_3(%arg0: i32) -> (i32, i32) {
    %c0_i32 = arith.constant 0 : i32
    %c0_i32_0 = arith.constant 0 : i32
    %c0_i32_1 = arith.constant 0 : i32
    return %c0_i32, %c0_i32_0 : i32, i32
  }
  func.func @transform_4(%arg0: i32) -> (i32, i32) {
    %c0_i32 = arith.constant 0 : i32
    %c0_i32_0 = arith.constant 0 : i32
    return %arg0, %c0_i32 : i32, i32
  }
}

</mosaic_0001>

<llo_original>
// kernel: tpu_custom_call.1
$region0: #{tpu_custom_call.1}
  #allocation0 [shape = 'u32[]', space=smem, size = 0x4, offset = 0x4, fixed_abs, tag = 'smem constant byte address 0x4 - core index']
  #allocation1 [shape = 'u32[144,128]{1,0:T(1,128)}', space=vmem, size = 0x12000, scoped, tag = 'internal scratch']
  %s0 = inlined_call_operand.vmem [shape: bf16[512,32], index: 0, kind: input, shape index: {}]
  %s1 = inlined_call_operand.vmem [shape: bf16[32,64], index: 1, kind: input, shape index: {}]
  %s2 = inlined_call_operand.vmem [shape: f32[1,64], index: 2, kind: input, shape index: {}]
  %s3 = inlined_call_operand.vmem [shape: f32[1,64], index: 3, kind: input, shape index: {}]
  %s4 = inlined_call_operand.vmem [shape: bf16[512,64], index: 4, kind: output, shape index: {}]
  %s5 = sld [smem:[#allocation0]]
  $region49: #{tpu_custom_call.1} parent=0
    _
  %s7 = ssub.s32 1, %s5
  %s8 = scalar_select 0, %s7, %s5
  loop: start=0, step=1, limit=4
  $region2: #{tpu_custom_call.1} parent=0 // loop_pre_header
    _
  $region3: #{tpu_custom_call.1} parent=0 // loop_header
    %s10 = sphi 0, %s14
    %p11 = scmp.ge.s32.totalorder %s10, 4
    %s20 = sphi 0, %s22
    %s23 = sphi 0, %s20
    %s24 = sphi 0, %s23
    %s40 = sphi 0, %s24
    %s44 = sphi 0, %s44
    %s46 = sphi 0, %s44
    %s47 = sphi 0, %s46
    %s61 = sphi 0, %s47
    %s65 = sphi 0, %s65
    %s67 = sphi 0, %s65
    %s68 = sphi 0, %s67
    %s82 = sphi 0, %s68
    %s86 = sphi 0, %s86
    %s88 = sphi 0, %s86
    %s89 = sphi 0, %s88
    %s103 = sphi 0, %s89
    %s109 = sphi 0, %s111
    %s112 = sphi 0, %s109
    %s113 = sphi 0, %s112
    %s129 = sphi 0, %s113
  $region4: #{tpu_custom_call.1} parent=0 // loop_header_branch
    %13 = sbr.rel (%p11) target = $region8
  $region5: #{tpu_custom_call.1} parent=0 // loop_body
    %s15 = ssub.s32 %s10, 1
    %s16 = ssub.s32 %s10, 2
    %s17 = sadd.s32 %s10, 1
    %s18 = ssub.s32 %s10, %s17
    %p19 = scmp.eq.s32.totalorder %s18, 0
    %s21 = sadd.s32 %s20, 1
    %s22 = scalar_select %p19, %s20, %s21
    %p25 = pneg %p19
    %p26 = scmp.eq.s32.totalorder %s10, 1
    %p27 = por %p25, %p26
    %p28 = scmp.ne.s32.totalorder %s20, %s23
    %p29 = scmp.eq.s32.totalorder %s10, 0
    %p30 = por %p28, %p29
    %p31 = scmp.ne.s32.totalorder %s20, %s23
    %p32 = scmp.eq.s32.totalorder %s15, 1
    %p33 = por %p31, %p32
    %p34 = scmp.ne.s32.totalorder %s23, %s24
    %p35 = scmp.eq.s32.totalorder %s15, 0
    %p36 = por %p34, %p35
    %p37 = scmp.ne.s32.totalorder %s23, %s24
    %p38 = scmp.eq.s32.totalorder %s16, 1
    %p39 = por %p37, %p38
    %p41 = scmp.ne.s32.totalorder %s24, %s40
    %p42 = scmp.eq.s32.totalorder %s16, 0
    %p43 = por %p41, %p42
    %s45 = sadd.s32 %s44, 1
    %p48 = scmp.eq.s32.totalorder %s10, 1
    %p49 = scmp.ne.s32.totalorder %s44, %s46
    %p50 = scmp.eq.s32.totalorder %s10, 0
    %p51 = por %p49, %p50
    %p52 = scmp.ne.s32.totalorder %s44, %s46
    %p53 = scmp.eq.s32.totalorder %s15, 1
    %p54 = por %p52, %p53
    %p55 = scmp.ne.s32.totalorder %s46, %s47
    %p56 = scmp.eq.s32.totalorder %s15, 0
    %p57 = por %p55, %p56
    %p58 = scmp.ne.s32.totalorder %s46, %s47
    %p59 = scmp.eq.s32.totalorder %s16, 1
    %p60 = por %p58, %p59
    %p62 = scmp.ne.s32.totalorder %s47, %s61
    %p63 = scmp.eq.s32.totalorder %s16, 0
    %p64 = por %p62, %p63
    %s66 = sadd.s32 %s65, 1
    %p69 = scmp.eq.s32.totalorder %s10, 1
    %p70 = scmp.ne.s32.totalorder %s65, %s67
    %p71 = scmp.eq.s32.totalorder %s10, 0
    %p72 = por %p70, %p71
    %p73 = scmp.ne.s32.totalorder %s65, %s67
    %p74 = scmp.eq.s32.totalorder %s15, 1
    %p75 = por %p73, %p74
    %p76 = scmp.ne.s32.totalorder %s67, %s68
    %p77 = scmp.eq.s32.totalorder %s15, 0
    %p78 = por %p76, %p77
    %p79 = scmp.ne.s32.totalorder %s67, %s68
    %p80 = scmp.eq.s32.totalorder %s16, 1
    %p81 = por %p79, %p80
    %p83 = scmp.ne.s32.totalorder %s68, %s82
    %p84 = scmp.eq.s32.totalorder %s16, 0
    %p85 = por %p83, %p84
    %s87 = sadd.s32 %s86, 1
    %p90 = scmp.eq.s32.totalorder %s10, 1
    %p91 = scmp.ne.s32.totalorder %s86, %s88
    %p92 = scmp.eq.s32.totalorder %s10, 0
    %p93 = por %p91, %p92
    %p94 = scmp.ne.s32.totalorder %s86, %s88
    %p95 = scmp.eq.s32.totalorder %s15, 1
    %p96 = por %p94, %p95
    %p97 = scmp.ne.s32.totalorder %s88, %s89
    %p98 = scmp.eq.s32.totalorder %s15, 0
    %p99 = por %p97, %p98
    %p100 = scmp.ne.s32.totalorder %s88, %s89
    %p101 = scmp.eq.s32.totalorder %s16, 1
    %p102 = por %p100, %p101
    %p104 = scmp.ne.s32.totalorder %s89, %s103
    %p105 = scmp.eq.s32.totalorder %s16, 0
    %p106 = por %p104, %p105
    %s107 = ssub.s32 %s10, %s17
    %p108 = scmp.eq.s32.totalorder %s107, 0
    %s110 = sadd.s32 %s109, 1
    %s111 = scalar_select %p108, %s109, %s110
    %p114 = pneg %p108
    %p115 = scmp.eq.s32.totalorder %s10, 1
    %p116 = por %p114, %p115
    %p117 = scmp.ne.s32.totalorder %s109, %s112
    %p118 = scmp.eq.s32.totalorder %s10, 0
    %p119 = por %p117, %p118
    %p120 = scmp.ne.s32.totalorder %s109, %s112
    %p121 = scmp.eq.s32.totalorder %s15, 1
    %p122 = por %p120, %p121
    %p123 = scmp.ne.s32.totalorder %s112, %s113
    %p124 = scmp.eq.s32.totalorder %s15, 0
    %p125 = por %p123, %p124
    %p126 = scmp.ne.s32.totalorder %s112, %s113
    %p127 = scmp.eq.s32.totalorder %s16, 1
    %p128 = por %p126, %p127
    %p130 = scmp.ne.s32.totalorder %s113, %s129
    %p131 = scmp.eq.s32.totalorder %s16, 0
    %p132 = por %p130, %p131
    %p133 = scmp.le.s32.totalorder 1, %s10
    %p134 = scmp.lt.s32.totalorder %s10, 3
    %p135 = pnand %p133, %p134
    %p136 = pneg %p135
    // Predicated region
    $region9: #{tpu_custom_call.1} parent=5 // pred_check
      _
    $region10: #{tpu_custom_call.1} parent=5 // pred_check_branch
      %138 = sbr.rel (%p135) target = $region12
    $region11: #{tpu_custom_call.1} parent=5 // pred_region
      %s139 = ssub.s32 %s10, 1
      // Predicated region
      $region13: #{tpu_custom_call.1} parent=11 // pred_check
        %p140 = pneg %p57
      $region14: #{tpu_custom_call.1} parent=11 // pred_check_branch
        %142 = sbr.rel (%p140) target = $region16
      $region15: #{tpu_custom_call.1} parent=11 // pred_region
        _
      $region16: #{tpu_custom_call.1} parent=11 // pred_fallthru
        _
      // Predicated region
      $region17: #{tpu_custom_call.1} parent=11 // pred_check
        %p143 = pneg %p78
      $region18: #{tpu_custom_call.1} parent=11 // pred_check_branch
        %145 = sbr.rel (%p143) target = $region20
      $region19: #{tpu_custom_call.1} parent=11 // pred_region
        _
      $region20: #{tpu_custom_call.1} parent=11 // pred_fallthru
        _
      // Predicated region
      $region21: #{tpu_custom_call.1} parent=11 // pred_check
        %p146 = pneg %p99
      $region22: #{tpu_custom_call.1} parent=11 // pred_check_branch
        %148 = sbr.rel (%p146) target = $region24
      $region23: #{tpu_custom_call.1} parent=11 // pred_region
        _
      $region24: #{tpu_custom_call.1} parent=11 // pred_fallthru
        _
    $region12: #{tpu_custom_call.1} parent=5 // pred_fallthru
      _
    %p149 = scmp.lt.s32.totalorder %s10, 2
    // Predicated region
    $region25: #{tpu_custom_call.1} parent=5 // pred_check
      %p150 = pneg %p149
    $region26: #{tpu_custom_call.1} parent=5 // pred_check_branch
      %152 = sbr.rel (%p150) target = $region28
    $region27: #{tpu_custom_call.1} parent=5 // pred_region
      // Predicated region
      $region29: #{tpu_custom_call.1} parent=27 // pred_check
        %p153 = pneg %p30
      $region30: #{tpu_custom_call.1} parent=27 // pred_check_branch
        %155 = sbr.rel (%p153) target = $region32
      $region31: #{tpu_custom_call.1} parent=27 // pred_region
        %s156 = smul.u32 32, %s10
        %p157 = scmp.lt.s32.totalorder %s156, 63
        %s158 = scalar_select %p157, %s156, 63
        %s159 = smul.addr %s158, 4
        %s160 = scalar_lea.vmem %s0, %s159
        %s161 = smul.u32 32, %s10
      $region32: #{tpu_custom_call.1} parent=27 // pred_fallthru
        _
    $region28: #{tpu_custom_call.1} parent=5 // pred_fallthru
      _
    %p162 = scmp.le.s32.totalorder 1, %s10
    %p163 = scmp.lt.s32.totalorder %s10, 3
    %p164 = pnand %p162, %p163
    %p165 = pneg %p164
    // Predicated region
    $region33: #{tpu_custom_call.1} parent=5 // pred_check
      _
    $region34: #{tpu_custom_call.1} parent=5 // pred_check_branch
      %167 = sbr.rel (%p164) target = $region36
    $region35: #{tpu_custom_call.1} parent=5 // pred_region
      %s168 = ssub.s32 %s10, 1
      %s169 = smul.u32 32, %s15
      %p170 = scmp.lt.s32.totalorder %s169, 63
      %s171 = scalar_select %p170, %s169, 63
      %s172 = smul.addr %s171, 4
      %s173 = scalar_lea.vmem %s0, %s172
      %p174 = pneg %p36
      %p175 = pneg %p33
      %p176 = pneg %p57
      %p177 = pneg %p54
      %p178 = pneg %p78
      %p179 = pneg %p75
      %p180 = pneg %p99
      %p181 = pneg %p96
      %p182 = pneg %p125
      %p183 = pneg %p122
      %s184 = smul.u32 32, %s15
      %p185 = scmp.lt.s32.totalorder %s184, 63
      %s186 = scalar_select %p185, %s184, 63
      %s187 = smul.addr %s186, 4
      %s188 = scalar_lea.vmem %s4, %s187
      %s189 = smul.u32 32, %s15
      %p190 = scmp.lt.s32.totalorder %s189, 63
      %s191 = scalar_select %p190, %s189, 63
      %s192 = smul.addr %s191, 4
      %s193 = scalar_lea.vmem %s0, %s192
      %s194 = smul.u32 32, %s15
      %s195 = smul.u32 32, %s15
      %p196 = scmp.lt.s32.totalorder %s195, 63
      %s197 = scalar_select %p196, %s195, 63
      %s198 = smul.addr %s197, 4
      %s199 = scalar_lea.vmem %s4, %s198
      %s200 = smul.u32 32, %s15
      %v202 = vld [vmem:[%s193] sm:$0xf]
      %v203 = vld [vmem:[%s193 + $0x4] sm:$0xf]
      %v204 = vld [vmem:[%s193 + $0x8] sm:$0xf]
      %v205 = vld [vmem:[%s193 + $0xc] sm:$0xf]
      %v206 = vld [vmem:[%s193 + $0x10] sm:$0xf]
      %v207 = vld [vmem:[%s193 + $0x14] sm:$0xf]
      %v208 = vld [vmem:[%s193 + $0x18] sm:$0xf]
      %v209 = vld [vmem:[%s193 + $0x1c] sm:$0xf]
      %v210 = vld [vmem:[%s193 + $0x20] sm:$0xf]
      %v211 = vld [vmem:[%s193 + $0x24] sm:$0xf]
      %v212 = vld [vmem:[%s193 + $0x28] sm:$0xf]
      %v213 = vld [vmem:[%s193 + $0x2c] sm:$0xf]
      %v214 = vld [vmem:[%s193 + $0x30] sm:$0xf]
      %v215 = vld [vmem:[%s193 + $0x34] sm:$0xf]
      %v216 = vld [vmem:[%s193 + $0x38] sm:$0xf]
      %v217 = vld [vmem:[%s193 + $0x3c] sm:$0xf]
      %v218 = vld [vmem:[%s193 + $0x40] sm:$0xf]
      %v219 = vld [vmem:[%s193 + $0x44] sm:$0xf]
      %v220 = vld [vmem:[%s193 + $0x48] sm:$0xf]
      %v221 = vld [vmem:[%s193 + $0x4c] sm:$0xf]
      %v222 = vld [vmem:[%s193 + $0x50] sm:$0xf]
      %v223 = vld [vmem:[%s193 + $0x54] sm:$0xf]
      %v224 = vld [vmem:[%s193 + $0x58] sm:$0xf]
      %v225 = vld [vmem:[%s193 + $0x5c] sm:$0xf]
      %v226 = vld [vmem:[%s193 + $0x60] sm:$0xf]
      %v227 = vld [vmem:[%s193 + $0x64] sm:$0xf]
      %v228 = vld [vmem:[%s193 + $0x68] sm:$0xf]
      %v229 = vld [vmem:[%s193 + $0x6c] sm:$0xf]
      %v230 = vld [vmem:[%s193 + $0x70] sm:$0xf]
      %v231 = vld [vmem:[%s193 + $0x74] sm:$0xf]
      %v232 = vld [vmem:[%s193 + $0x78] sm:$0xf]
      %v233 = vld [vmem:[%s193 + $0x7c] sm:$0xf]
      %v234 = vld [vmem:[%s1] sm:$0xf]
      %v235 = vld [vmem:[%s1 + $0x4] sm:$0xf]
      %v236 = vld [vmem:[%s1 + $0x8] sm:$0xf]
      %v237 = vld [vmem:[%s1 + $0xc] sm:$0xf]
      %v270 = vunpack.c.l.b16 %v202
      %v271 = vunpack.c.l.b16 %v203
      %v272 = vunpack.c.l.b16 %v204
      %v273 = vunpack.c.l.b16 %v205
      %v274 = vunpack.c.l.b16 %v206
      %v275 = vunpack.c.l.b16 %v207
      %v276 = vunpack.c.l.b16 %v208
      %v277 = vunpack.c.l.b16 %v209
      %v278 = vunpack.c.l.b16 %v210
      %v279 = vunpack.c.l.b16 %v211
      %v280 = vunpack.c.l.b16 %v212
      %v281 = vunpack.c.l.b16 %v213
      %v282 = vunpack.c.l.b16 %v214
      %v283 = vunpack.c.l.b16 %v215
      %v284 = vunpack.c.l.b16 %v216
      %v285 = vunpack.c.l.b16 %v217
      %v286 = vunpack.c.l.b16 %v218
      %v287 = vunpack.c.l.b16 %v219
      %v288 = vunpack.c.l.b16 %v220
      %v289 = vunpack.c.l.b16 %v221
      %v290 = vunpack.c.l.b16 %v222
      %v291 = vunpack.c.l.b16 %v223
      %v292 = vunpack.c.l.b16 %v224
      %v293 = vunpack.c.l.b16 %v225
      %v294 = vunpack.c.l.b16 %v226
      %v295 = vunpack.c.l.b16 %v227
      %v296 = vunpack.c.l.b16 %v228
      %v297 = vunpack.c.l.b16 %v229
      %v298 = vunpack.c.l.b16 %v230
      %v299 = vunpack.c.l.b16 %v231
      %v300 = vunpack.c.l.b16 %v232
      %v301 = vunpack.c.l.b16 %v233
      %v302 = vpack.c.b16 %v271, %v270
      %v303 = vpack.c.b16 %v273, %v272
      %v304 = vpack.c.b16 %v275, %v274
      %v305 = vpack.c.b16 %v277, %v276
      %v306 = vpack.c.b16 %v279, %v278
      %v307 = vpack.c.b16 %v281, %v280
      %v308 = vpack.c.b16 %v283, %v282
      %v309 = vpack.c.b16 %v285, %v284
      %v310 = vpack.c.b16 %v287, %v286
      %v311 = vpack.c.b16 %v289, %v288
      %v312 = vpack.c.b16 %v291, %v290
      %v313 = vpack.c.b16 %v293, %v292
      %v314 = vpack.c.b16 %v295, %v294
      %v315 = vpack.c.b16 %v297, %v296
      %v316 = vpack.c.b16 %v299, %v298
      %v317 = vpack.c.b16 %v301, %v300
      %v322 = vunpack.c.l.b16 %v234
      %v323 = vunpack.c.l.b16 %v235
      %v324 = vunpack.c.l.b16 %v236
      %v325 = vunpack.c.l.b16 %v237
      %v326 = vpack.c.b16 %v323, %v322
      %v327 = vpack.c.b16 %v325, %v324
      %vm330 = vcmask 261120
      %v332 = vsel %vm330, %v302, 0
      %v335 = vsel %vm330, %v303, 0
      %v338 = vsel %vm330, %v304, 0
      %v341 = vsel %vm330, %v305, 0
      %v344 = vsel %vm330, %v306, 0
      %v347 = vsel %vm330, %v307, 0
      %v350 = vsel %vm330, %v308, 0
      %v353 = vsel %vm330, %v309, 0
      %v356 = vsel %vm330, %v310, 0
      %v359 = vsel %vm330, %v311, 0
      %v362 = vsel %vm330, %v312, 0
      %v365 = vsel %vm330, %v313, 0
      %v368 = vsel %vm330, %v314, 0
      %v371 = vsel %vm330, %v315, 0
      %v374 = vsel %vm330, %v316, 0
      %v377 = vsel %vm330, %v317, 0
      %379 = vmatprep.subr.bf16.mxu0 0
      %380 = vmatpush1.bf16.msra.mxu0 %v326
      %381 = vmatprep.subr.bf16.mxu0 0
      %382 = vmatpush1.bf16.msra.mxu0 %v327
      %383 = vmatprep.subr.bf16.mxu0 0
      %384 = vmatpush1.bf16.msra.mxu0 0
      %385 = vmatprep.subr.bf16.mxu0 0
      %386 = vmatpush1.bf16.msra.mxu0 0
      %387 = vmatprep.subr.bf16.mxu0 0
      %388 = vmatpush1.bf16.msra.mxu0 0
      %389 = vmatprep.subr.bf16.mxu0 0
      %390 = vmatpush1.bf16.msra.mxu0 0
      %391 = vmatprep.subr.bf16.mxu0 0
      %392 = vmatpush1.bf16.msra.mxu0 0
      %393 = vmatprep.subr.bf16.mxu0 0
      %394 = vmatpush1.bf16.msra.mxu0 0
      %395 = vmatprep.subr.bf16.mxu0 0
      %396 = vmatpush1.bf16.msra.mxu0 0
      %397 = vmatprep.subr.bf16.mxu0 0
      %398 = vmatpush1.bf16.msra.mxu0 0
      %399 = vmatprep.subr.bf16.mxu0 0
      %400 = vmatpush1.bf16.msra.mxu0 0
      %401 = vmatprep.subr.bf16.mxu0 0
      %402 = vmatpush1.bf16.msra.mxu0 0
      %403 = vmatprep.subr.bf16.mxu0 0
      %404 = vmatpush1.bf16.msra.mxu0 0
      %405 = vmatprep.subr.bf16.mxu0 0
      %406 = vmatpush1.bf16.msra.mxu0 0
      %407 = vmatprep.subr.bf16.mxu0 0
      %408 = vmatpush1.bf16.msra.mxu0 0
      %409 = vmatprep.subr.bf16.mxu0 0
      %410 = vmatpush1.bf16.msra.mxu0 0
      %411 = vmatprep.mubr.bf16.mxu0 0
      %412 = vmatmul.mubr.bf16.gmra.mrb[0].mxu0 %v332
      %v413 = vpop.f32.mrb[0].mxu0
      %v414 = vadd.f32 0.0, %v413
      %v415 = vpop.f32.mrb[0].mxu0
      %v416 = vpop.f32.mrb[0].mxu0
      %v417 = vadd.f32 0.0, %v416
      %v418 = vpop.f32.mrb[0].mxu0
      %419 = vmatprep.mubr.bf16.mxu0 0
      %420 = vmatmul.mubr.bf16.gmra.mrb[0].mxu0 %v335
      %v421 = vpop.f32.mrb[0].mxu0
      %v422 = vadd.f32 0.0, %v421
      %v423 = vpop.f32.mrb[0].mxu0
      %v424 = vpop.f32.mrb[0].mxu0
      %v425 = vadd.f32 0.0, %v424
      %v426 = vpop.f32.mrb[0].mxu0
      %427 = vmatprep.mubr.bf16.mxu0 0
      %428 = vmatmul.mubr.bf16.gmra.mrb[0].mxu0 %v338
      %v429 = vpop.f32.mrb[0].mxu0
      %v430 = vadd.f32 0.0, %v429
      %v431 = vpop.f32.mrb[0].mxu0
      %v432 = vpop.f32.mrb[0].mxu0
      %v433 = vadd.f32 0.0, %v432
      %v434 = vpop.f32.mrb[0].mxu0
      %435 = vmatprep.mubr.bf16.mxu0 0
      %436 = vmatmul.mubr.bf16.gmra.mrb[0].mxu0 %v341
      %v437 = vpop.f32.mrb[0].mxu0
      %v438 = vadd.f32 0.0, %v437
      %v439 = vpop.f32.mrb[0].mxu0
      %v440 = vpop.f32.mrb[0].mxu0
      %v441 = vadd.f32 0.0, %v440
      %v442 = vpop.f32.mrb[0].mxu0
      %443 = vmatprep.mubr.bf16.mxu0 0
      %444 = vmatmul.mubr.bf16.gmra.mrb[0].mxu0 %v344
      %v445 = vpop.f32.mrb[0].mxu0
      %v446 = vadd.f32 0.0, %v445
      %v447 = vpop.f32.mrb[0].mxu0
      %v448 = vpop.f32.mrb[0].mxu0
      %v449 = vadd.f32 0.0, %v448
      %v450 = vpop.f32.mrb[0].mxu0
      %451 = vmatprep.mubr.bf16.mxu0 0
      %452 = vmatmul.mubr.bf16.gmra.mrb[0].mxu0 %v347
      %v453 = vpop.f32.mrb[0].mxu0
      %v454 = vadd.f32 0.0, %v453
      %v455 = vpop.f32.mrb[0].mxu0
      %v456 = vpop.f32.mrb[0].mxu0
      %v457 = vadd.f32 0.0, %v456
      %v458 = vpop.f32.mrb[0].mxu0
      %459 = vmatprep.mubr.bf16.mxu0 0
      %460 = vmatmul.mubr.bf16.gmra.mrb[0].mxu0 %v350
      %v461 = vpop.f32.mrb[0].mxu0
      %v462 = vadd.f32 0.0, %v461
      %v463 = vpop.f32.mrb[0].mxu0
      %v464 = vpop.f32.mrb[0].mxu0
      %v465 = vadd.f32 0.0, %v464
      %v466 = vpop.f32.mrb[0].mxu0
      %467 = vmatprep.mubr.bf16.mxu0 0
      %468 = vmatmul.mubr.bf16.gmra.mrb[0].mxu0 %v353
      %v469 = vpop.f32.mrb[0].mxu0
      %v470 = vadd.f32 0.0, %v469
      %v471 = vpop.f32.mrb[0].mxu0
      %v472 = vpop.f32.mrb[0].mxu0
      %v473 = vadd.f32 0.0, %v472
      %v474 = vpop.f32.mrb[0].mxu0
      %475 = vmatprep.mubr.bf16.mxu0 0
      %476 = vmatmul.mubr.bf16.gmra.mrb[0].mxu0 %v356
      %v477 = vpop.f32.mrb[0].mxu0
      %v478 = vadd.f32 0.0, %v477
      %v479 = vpop.f32.mrb[0].mxu0
      %v480 = vpop.f32.mrb[0].mxu0
      %v481 = vadd.f32 0.0, %v480
      %v482 = vpop.f32.mrb[0].mxu0
      %483 = vmatprep.mubr.bf16.mxu0 0
      %484 = vmatmul.mubr.bf16.gmra.mrb[0].mxu0 %v359
      %v485 = vpop.f32.mrb[0].mxu0
      %v486 = vadd.f32 0.0, %v485
      %v487 = vpop.f32.mrb[0].mxu0
      %v488 = vpop.f32.mrb[0].mxu0
      %v489 = vadd.f32 0.0, %v488
      %v490 = vpop.f32.mrb[0].mxu0
      %491 = vmatprep.mubr.bf16.mxu0 0
      %492 = vmatmul.mubr.bf16.gmra.mrb[0].mxu0 %v362
      %v493 = vpop.f32.mrb[0].mxu0
      %v494 = vadd.f32 0.0, %v493
      %v495 = vpop.f32.mrb[0].mxu0
      %v496 = vpop.f32.mrb[0].mxu0
      %v497 = vadd.f32 0.0, %v496
      %v498 = vpop.f32.mrb[0].mxu0
      %499 = vmatprep.mubr.bf16.mxu0 0
      %500 = vmatmul.mubr.bf16.gmra.mrb[0].mxu0 %v365
      %v501 = vpop.f32.mrb[0].mxu0
      %v502 = vadd.f32 0.0, %v501
      %v503 = vpop.f32.mrb[0].mxu0
      %v504 = vpop.f32.mrb[0].mxu0
      %v505 = vadd.f32 0.0, %v504
      %v506 = vpop.f32.mrb[0].mxu0
      %507 = vmatprep.mubr.bf16.mxu0 0
      %508 = vmatmul.mubr.bf16.gmra.mrb[0].mxu0 %v368
      %v509 = vpop.f32.mrb[0].mxu0
      %v510 = vadd.f32 0.0, %v509
      %v511 = vpop.f32.mrb[0].mxu0
      %v512 = vpop.f32.mrb[0].mxu0
      %v513 = vadd.f32 0.0, %v512
      %v514 = vpop.f32.mrb[0].mxu0
      %515 = vmatprep.mubr.bf16.mxu0 0
      %516 = vmatmul.mubr.bf16.gmra.mrb[0].mxu0 %v371
      %v517 = vpop.f32.mrb[0].mxu0
      %v518 = vadd.f32 0.0, %v517
      %v519 = vpop.f32.mrb[0].mxu0
      %v520 = vpop.f32.mrb[0].mxu0
      %v521 = vadd.f32 0.0, %v520
      %v522 = vpop.f32.mrb[0].mxu0
      %523 = vmatprep.mubr.bf16.mxu0 0
      %524 = vmatmul.mubr.bf16.gmra.mrb[0].mxu0 %v374
      %v525 = vpop.f32.mrb[0].mxu0
      %v526 = vadd.f32 0.0, %v525
      %v527 = vpop.f32.mrb[0].mxu0
      %v528 = vpop.f32.mrb[0].mxu0
      %v529 = vadd.f32 0.0, %v528
      %v530 = vpop.f32.mrb[0].mxu0
      %531 = vmatprep.mubr.bf16.mxu0 0
      %532 = vmatmul.mubr.bf16.gmra.mrb[0].mxu0 %v377
      %v533 = vpop.f32.mrb[0].mxu0
      %v534 = vadd.f32 0.0, %v533
      %v535 = vpop.f32.mrb[0].mxu0
      %v536 = vpop.f32.mrb[0].mxu0
      %v537 = vadd.f32 0.0, %v536
      %v538 = vpop.f32.mrb[0].mxu0
      %539 = vdwg.mxu0
      %v540 = vld [vmem:[%s2] sm:$0x1]
      %v542 = vlaneseq
      %v543 = vshrl.u32 %v542, 7
      %v544 = vsub.s32 0, %v543
      %v545 = vrot.slane %v540, %v544
      %v547 = vmul.f32 %v414, %v545
      %v548 = vmul.f32 %v417, %v545
      %v549 = vmul.f32 %v422, %v545
      %v550 = vmul.f32 %v425, %v545
      %v551 = vmul.f32 %v430, %v545
      %v552 = vmul.f32 %v433, %v545
      %v553 = vmul.f32 %v438, %v545
      %v554 = vmul.f32 %v441, %v545
      %v555 = vmul.f32 %v446, %v545
      %v556 = vmul.f32 %v449, %v545
      %v557 = vmul.f32 %v454, %v545
      %v558 = vmul.f32 %v457, %v545
      %v559 = vmul.f32 %v462, %v545
      %v560 = vmul.f32 %v465, %v545
      %v561 = vmul.f32 %v470, %v545
      %v562 = vmul.f32 %v473, %v545
      %v563 = vmul.f32 %v478, %v545
      %v564 = vmul.f32 %v481, %v545
      %v565 = vmul.f32 %v486, %v545
      %v566 = vmul.f32 %v489, %v545
      %v567 = vmul.f32 %v494, %v545
      %v568 = vmul.f32 %v497, %v545
      %v569 = vmul.f32 %v502, %v545
      %v570 = vmul.f32 %v505, %v545
      %v571 = vmul.f32 %v510, %v545
      %v572 = vmul.f32 %v513, %v545
      %v573 = vmul.f32 %v518, %v545
      %v574 = vmul.f32 %v521, %v545
      %v575 = vmul.f32 %v526, %v545
      %v576 = vmul.f32 %v529, %v545
      %v577 = vmul.f32 %v534, %v545
      %v578 = vmul.f32 %v537, %v545
      %v579 = vld [vmem:[%s3] sm:$0x1]
      %v581 = vlaneseq
      %v582 = vshrl.u32 %v581, 7
      %v583 = vsub.s32 0, %v582
      %v584 = vrot.slane %v579, %v583
      %v586 = vadd.f32 %v547, %v584
      %v587 = vadd.f32 %v548, %v584
      %v588 = vadd.f32 %v549, %v584
      %v589 = vadd.f32 %v550, %v584
      %v590 = vadd.f32 %v551, %v584
      %v591 = vadd.f32 %v552, %v584
      %v592 = vadd.f32 %v553, %v584
      %v593 = vadd.f32 %v554, %v584
      %v594 = vadd.f32 %v555, %v584
      %v595 = vadd.f32 %v556, %v584
      %v596 = vadd.f32 %v557, %v584
      %v597 = vadd.f32 %v558, %v584
      %v598 = vadd.f32 %v559, %v584
      %v599 = vadd.f32 %v560, %v584
      %v600 = vadd.f32 %v561, %v584
      %v601 = vadd.f32 %v562, %v584
      %v602 = vadd.f32 %v563, %v584
      %v603 = vadd.f32 %v564, %v584
      %v604 = vadd.f32 %v565, %v584
      %v605 = vadd.f32 %v566, %v584
      %v606 = vadd.f32 %v567, %v584
      %v607 = vadd.f32 %v568, %v584
      %v608 = vadd.f32 %v569, %v584
      %v609 = vadd.f32 %v570, %v584
      %v610 = vadd.f32 %v571, %v584
      %v611 = vadd.f32 %v572, %v584
      %v612 = vadd.f32 %v573, %v584
      %v613 = vadd.f32 %v574, %v584
      %v614 = vadd.f32 %v575, %v584
      %v615 = vadd.f32 %v576, %v584
      %v616 = vadd.f32 %v577, %v584
      %v617 = vadd.f32 %v578, %v584
      %v618 = vmax.f32 %v586, 0.0
      %v619 = vmax.f32 %v587, 0.0
      %v620 = vmax.f32 %v588, 0.0
      %v621 = vmax.f32 %v589, 0.0
      %v622 = vmax.f32 %v590, 0.0
      %v623 = vmax.f32 %v591, 0.0
      %v624 = vmax.f32 %v592, 0.0
      %v625 = vmax.f32 %v593, 0.0
      %v626 = vmax.f32 %v594, 0.0
      %v627 = vmax.f32 %v595, 0.0
      %v628 = vmax.f32 %v596, 0.0
      %v629 = vmax.f32 %v597, 0.0
      %v630 = vmax.f32 %v598, 0.0
      %v631 = vmax.f32 %v599, 0.0
      %v632 = vmax.f32 %v600, 0.0
      %v633 = vmax.f32 %v601, 0.0
      %v634 = vmax.f32 %v602, 0.0
      %v635 = vmax.f32 %v603, 0.0
      %v636 = vmax.f32 %v604, 0.0
      %v637 = vmax.f32 %v605, 0.0
      %v638 = vmax.f32 %v606, 0.0
      %v639 = vmax.f32 %v607, 0.0
      %v640 = vmax.f32 %v608, 0.0
      %v641 = vmax.f32 %v609, 0.0
      %v642 = vmax.f32 %v610, 0.0
      %v643 = vmax.f32 %v611, 0.0
      %v644 = vmax.f32 %v612, 0.0
      %v645 = vmax.f32 %v613, 0.0
      %v646 = vmax.f32 %v614, 0.0
      %v647 = vmax.f32 %v615, 0.0
      %v648 = vmax.f32 %v616, 0.0
      %v649 = vmax.f32 %v617, 0.0
      %v650 = vpack.c.bf16 %v619, %v618
      %v651 = vpack.c.bf16 %v621, %v620
      %v652 = vpack.c.bf16 %v623, %v622
      %v653 = vpack.c.bf16 %v625, %v624
      %v654 = vpack.c.bf16 %v627, %v626
      %v655 = vpack.c.bf16 %v629, %v628
      %v656 = vpack.c.bf16 %v631, %v630
      %v657 = vpack.c.bf16 %v633, %v632
      %v658 = vpack.c.bf16 %v635, %v634
      %v659 = vpack.c.bf16 %v637, %v636
      %v660 = vpack.c.bf16 %v639, %v638
      %v661 = vpack.c.bf16 %v641, %v640
      %v662 = vpack.c.bf16 %v643, %v642
      %v663 = vpack.c.bf16 %v645, %v644
      %v664 = vpack.c.bf16 %v647, %v646
      %v665 = vpack.c.bf16 %v649, %v648
      %v682 = vunpack.c.l.b16 %v650
      %v683 = vunpack.c.h.b16 %v650
      %v684 = vunpack.c.l.b16 %v651
      %v685 = vunpack.c.h.b16 %v651
      %v686 = vunpack.c.l.b16 %v652
      %v687 = vunpack.c.h.b16 %v652
      %v688 = vunpack.c.l.b16 %v653
      %v689 = vunpack.c.h.b16 %v653
      %v690 = vunpack.c.l.b16 %v654
      %v691 = vunpack.c.h.b16 %v654
      %v692 = vunpack.c.l.b16 %v655
      %v693 = vunpack.c.h.b16 %v655
      %v694 = vunpack.c.l.b16 %v656
      %v695 = vunpack.c.h.b16 %v656
      %v696 = vunpack.c.l.b16 %v657
      %v697 = vunpack.c.h.b16 %v657
      %v698 = vunpack.c.l.b16 %v658
      %v699 = vunpack.c.h.b16 %v658
      %v700 = vunpack.c.l.b16 %v659
      %v701 = vunpack.c.h.b16 %v659
      %v702 = vunpack.c.l.b16 %v660
      %v703 = vunpack.c.h.b16 %v660
      %v704 = vunpack.c.l.b16 %v661
      %v705 = vunpack.c.h.b16 %v661
      %v706 = vunpack.c.l.b16 %v662
      %v707 = vunpack.c.h.b16 %v662
      %v708 = vunpack.c.l.b16 %v663
      %v709 = vunpack.c.h.b16 %v663
      %v710 = vunpack.c.l.b16 %v664
      %v711 = vunpack.c.h.b16 %v664
      %v712 = vunpack.c.l.b16 %v665
      %v713 = vunpack.c.h.b16 %v665
      %v714 = vpack.c.b16 %v682, %v682
      %v715 = vpack.c.b16 %v683, %v683
      %v716 = vpack.c.b16 %v684, %v684
      %v717 = vpack.c.b16 %v685, %v685
      %v718 = vpack.c.b16 %v686, %v686
      %v719 = vpack.c.b16 %v687, %v687
      %v720 = vpack.c.b16 %v688, %v688
      %v721 = vpack.c.b16 %v689, %v689
      %v722 = vpack.c.b16 %v690, %v690
      %v723 = vpack.c.b16 %v691, %v691
      %v724 = vpack.c.b16 %v692, %v692
      %v725 = vpack.c.b16 %v693, %v693
      %v726 = vpack.c.b16 %v694, %v694
      %v727 = vpack.c.b16 %v695, %v695
      %v728 = vpack.c.b16 %v696, %v696
      %v729 = vpack.c.b16 %v697, %v697
      %v730 = vpack.c.b16 %v698, %v698
      %v731 = vpack.c.b16 %v699, %v699
      %v732 = vpack.c.b16 %v700, %v700
      %v733 = vpack.c.b16 %v701, %v701
      %v734 = vpack.c.b16 %v702, %v702
      %v735 = vpack.c.b16 %v703, %v703
      %v736 = vpack.c.b16 %v704, %v704
      %v737 = vpack.c.b16 %v705, %v705
      %v738 = vpack.c.b16 %v706, %v706
      %v739 = vpack.c.b16 %v707, %v707
      %v740 = vpack.c.b16 %v708, %v708
      %v741 = vpack.c.b16 %v709, %v709
      %v742 = vpack.c.b16 %v710, %v710
      %v743 = vpack.c.b16 %v711, %v711
      %v744 = vpack.c.b16 %v712, %v712
      %v745 = vpack.c.b16 %v713, %v713
      %vm778 = vcmask 519168
      %779 = vst.msk [vmem:[%s199] sm:$0xf] %vm778, %v714
      %780 = vst.msk [vmem:[%s199 + $0x4] sm:$0xf] %vm778, %v715
      %781 = vst.msk [vmem:[%s199 + $0x8] sm:$0xf] %vm778, %v716
      %782 = vst.msk [vmem:[%s199 + $0xc] sm:$0xf] %vm778, %v717
      %783 = vst.msk [vmem:[%s199 + $0x10] sm:$0xf] %vm778, %v718
      %784 = vst.msk [vmem:[%s199 + $0x14] sm:$0xf] %vm778, %v719
      %785 = vst.msk [vmem:[%s199 + $0x18] sm:$0xf] %vm778, %v720
      %786 = vst.msk [vmem:[%s199 + $0x1c] sm:$0xf] %vm778, %v721
      %787 = vst.msk [vmem:[%s199 + $0x20] sm:$0xf] %vm778, %v722
      %788 = vst.msk [vmem:[%s199 + $0x24] sm:$0xf] %vm778, %v723
      %789 = vst.msk [vmem:[%s199 + $0x28] sm:$0xf] %vm778, %v724
      %790 = vst.msk [vmem:[%s199 + $0x2c] sm:$0xf] %vm778, %v725
      %791 = vst.msk [vmem:[%s199 + $0x30] sm:$0xf] %vm778, %v726
      %792 = vst.msk [vmem:[%s199 + $0x34] sm:$0xf] %vm778, %v727
      %793 = vst.msk [vmem:[%s199 + $0x38] sm:$0xf] %vm778, %v728
      %794 = vst.msk [vmem:[%s199 + $0x3c] sm:$0xf] %vm778, %v729
      %795 = vst.msk [vmem:[%s199 + $0x40] sm:$0xf] %vm778, %v730
      %796 = vst.msk [vmem:[%s199 + $0x44] sm:$0xf] %vm778, %v731
      %797 = vst.msk [vmem:[%s199 + $0x48] sm:$0xf] %vm778, %v732
      %798 = vst.msk [vmem:[%s199 + $0x4c] sm:$0xf] %vm778, %v733
      %799 = vst.msk [vmem:[%s199 + $0x50] sm:$0xf] %vm778, %v734
      %800 = vst.msk [vmem:[%s199 + $0x54] sm:$0xf] %vm778, %v735
      %801 = vst.msk [vmem:[%s199 + $0x58] sm:$0xf] %vm778, %v736
      %802 = vst.msk [vmem:[%s199 + $0x5c] sm:$0xf] %vm778, %v737
      %803 = vst.msk [vmem:[%s199 + $0x60] sm:$0xf] %vm778, %v738
      %804 = vst.msk [vmem:[%s199 + $0x64] sm:$0xf] %vm778, %v739
      %805 = vst.msk [vmem:[%s199 + $0x68] sm:$0xf] %vm778, %v740
      %806 = vst.msk [vmem:[%s199 + $0x6c] sm:$0xf] %vm778, %v741
      %807 = vst.msk [vmem:[%s199 + $0x70] sm:$0xf] %vm778, %v742
      %808 = vst.msk [vmem:[%s199 + $0x74] sm:$0xf] %vm778, %v743
      %809 = vst.msk [vmem:[%s199 + $0x78] sm:$0xf] %vm778, %v744
      %810 = vst.msk [vmem:[%s199 + $0x7c] sm:$0xf] %vm778, %v745
      %s811 = smul.u32 32, %s15
      %p812 = scmp.lt.s32.totalorder %s811, 63
      %s813 = scalar_select %p812, %s811, 63
      %s814 = smul.addr %s813, 4
      %s815 = scalar_lea.vmem %s4, %s814
      // Predicated region
      $region37: #{tpu_custom_call.1} parent=35 // pred_check
        %p816 = pneg %p122
      $region38: #{tpu_custom_call.1} parent=35 // pred_check_branch
        %818 = sbr.rel (%p816) target = $region40
      $region39: #{tpu_custom_call.1} parent=35 // pred_region
        %s819 = smul.u32 32, %s15
      $region40: #{tpu_custom_call.1} parent=35 // pred_fallthru
        _
    $region36: #{tpu_custom_call.1} parent=5 // pred_fallthru
      _
    %p820 = scmp.le.s32.totalorder 2, %s10
    // Predicated region
    $region41: #{tpu_custom_call.1} parent=5 // pred_check
      %p821 = pneg %p820
    $region42: #{tpu_custom_call.1} parent=5 // pred_check_branch
      %823 = sbr.rel (%p821) target = $region44
    $region43: #{tpu_custom_call.1} parent=5 // pred_region
      %s824 = ssub.s32 %s10, 2
      // Predicated region
      $region45: #{tpu_custom_call.1} parent=43 // pred_check
        %p825 = pneg %p128
      $region46: #{tpu_custom_call.1} parent=43 // pred_check_branch
        %827 = sbr.rel (%p825) target = $region48
      $region47: #{tpu_custom_call.1} parent=43 // pred_region
        %s828 = smul.u32 32, %s16
        %p829 = scmp.lt.s32.totalorder %s828, 63
        %s830 = scalar_select %p829, %s828, 63
        %s831 = smul.addr %s830, 4
        %s832 = scalar_lea.vmem %s4, %s831
      $region48: #{tpu_custom_call.1} parent=43 // pred_fallthru
        _
    $region44: #{tpu_custom_call.1} parent=5 // pred_fallthru
      _
  $region6: #{tpu_custom_call.1} parent=0 // loop_footer
    %s14 = sadd.s32 1, %s10
  $region7: #{tpu_custom_call.1} parent=0 // loop_footer_branch
    %9 = sbr.rel target = $region3
  $region8: #{tpu_custom_call.1} parent=0 // loop_exit
    _

</llo_original>
